<compile_context>
chip_gen: v6e
topology: v6e:2x2x1
jax: 0.10.0
libtpu: 0.0.40
codegen_flags: <defaults>
</compile_context>

<pallas_src>
import math
import functools

import jax
import jax.numpy as jnp
from jax.experimental import pallas as pl
from jax.experimental.pallas import tpu as pltpu


def _cdiv(a, b):
    return -(-a // b)


def _sdpa_kernel(seed_ref, q_ref, k_ref, v_ref, *out_refs, scale, dropout_rate,
                 return_attn):
    """One grid step: a (Gt, Lq, *) tile of queries against all keys/values."""
    # Fold 1/sqrt(d_k) into the (Gt, Lq, Dk) query tile: cheaper than scaling
    # the (Gt, Lq, L) score matrix and stays inside the kernel.
    q = q_ref[...] * jnp.asarray(scale, q_ref.dtype)
    s = jnp.einsum("gqd,gkd->gqk", q, k_ref[...],
                   preferred_element_type=jnp.float32)
    m = jnp.max(s, axis=-1, keepdims=True)
    e = jnp.exp(s - m)
    denom = jnp.sum(e, axis=-1, keepdims=True)
    # approx=False keeps full f32 accuracy; flip to approx=True (EUP slot) once
    # the kernel stops being store/DMA bound.
    p = e * pl.reciprocal(denom, approx=False)

    if dropout_rate > 0.0:
        # Inverted dropout on the attention probabilities (nn.Dropout
        # semantics; RNG stream differs bit-for-bit from torch).
        # Unique PRNG stream per call and per grid step.
        step = pl.program_id(0) * pl.num_programs(1) + pl.program_id(1)
        n_steps = pl.num_programs(0) * pl.num_programs(1)
        pltpu.prng_seed(seed_ref[0] * n_steps + step)
        bits = pltpu.bitcast(pltpu.prng_random_bits(p.shape), jnp.uint32)
        threshold = jnp.uint32(min(int(dropout_rate * float(2 ** 32)), 2 ** 32 - 1))
        keep = bits >= threshold                  # unsigned compare: P(keep) = 1 - rate
        p = jnp.where(keep, p * (1.0 / (1.0 - dropout_rate)), 0.0)

    o = jnp.einsum("gqk,gkd->gqd", p.astype(v_ref.dtype), v_ref[...],
                   preferred_element_type=jnp.float32)

    o_ref = out_refs[0]
    o_ref[...] = o.astype(o_ref.dtype)
    if return_attn:
        p_ref = out_refs[1]
        p_ref[...] = p.astype(p_ref.dtype)


def _plan_tiles(G, L, Dk, Dv, itemsize, use_dropout, return_attn):
    """Pick (group_tile, query_tile, est_bytes, vmem_cap) from a generation-aware budget."""
    try:
        vmem_cap = int(pltpu.get_tpu_info().vmem_capacity_bytes)
    except Exception:
        vmem_cap = 64 * 1024 * 1024        # conservative fallback (v7x-sized)
    # Target per-step working set (incl. double buffering): ~1/3 of physical
    # VMEM, capped so per-step tiles never get pathologically large.
    budget = min(vmem_cap // 3, 32 * 1024 * 1024)

    def step_bytes(gt, lq):
        # Pallas double-buffers every in/out BlockSpec (x2); the softmax /
        # output intermediates (and PRNG bits) live once, in 32-bit.
        q_b = gt * lq * Dk * itemsize
        k_b = gt * L * Dk * itemsize
        v_b = gt * L * Dv * itemsize
        o_b = gt * lq * Dv * itemsize
        p_b = gt * lq * L * itemsize if return_attn else 0
        interm = gt * lq * L * 4 + gt * lq * Dv * 4
        if use_dropout:
            interm += gt * lq * L * 4
        return 2 * (q_b + k_b + v_b + o_b + p_b) + interm

    # Query-tile candidates: full L (always a legal block dim), otherwise
    # multiples of 8 (sublane granularity required by BlockSpec).
    lq_candidates = [L] + list(range((L // 8) * 8, 0, -8))
    seen = set()
    lq_candidates = [lq for lq in lq_candidates
                     if lq <= L and not (lq in seen or seen.add(lq))]

    # Keep >= 2 grid steps so multi-TensorCore chips (v7x) can shard the
    # "parallel" grid; also bound the batched-matmul size per step.
    gt_cap = max(1, min(_cdiv(G, 2), 64))

    for lq in lq_candidates:
        if step_bytes(1, lq) > budget:
            continue
        gt = 1
        for cand in range(gt_cap, 0, -1):
            if step_bytes(cand, lq) <= budget:
                gt = cand
                break
        return gt, lq, step_bytes(gt, lq), vmem_cap

    # Nothing fits (enormous L even at the smallest tile): take the smallest
    # legal tile and let the raised vmem_limit absorb as much as possible.
    lq = min(L, 8)
    return 1, lq, step_bytes(1, lq), vmem_cap


def scaled_dot_product_attention(query, key, value, *, dropout_rate=0.0,
                                 training=False, seed=0, return_attn=True):
    """query/key: (B, H, L, Dk); value: (B, H, L, Dv).

    Returns (weighted_value (B, H, L, Dv), p_attn (B, H, L, L)),
    matching ScaledDotProductAttention.forward (dropout=None <=> dropout_rate=0).
    With return_attn=False, p_attn is neither written to HBM nor returned.
    """
    B, H, L, Dk = query.shape
    Dv = value.shape[-1]
    scale = 1.0 / math.sqrt(Dk)

    # Flatten (B, H) -> G groups; each grid step streams Gt whole heads.
    G = B * H
    q = query.reshape(G, L, Dk)
    k = key.reshape(G, L, Dk)
    v = value.reshape(G, L, Dv)

    use_dropout = bool(training) and float(dropout_rate) > 0.0
    itemsize = jnp.dtype(query.dtype).itemsize
    Gt, Lqt, est_bytes, vmem_cap = _plan_tiles(G, L, Dk, Dv, itemsize,
                                               use_dropout, return_attn)
    grid = (_cdiv(G, Gt), _cdiv(L, Lqt))
    # Raise the scoped-VMEM limit to cover the planned working set (x2 margin
    # for compiler scratch / padding), with headroom below physical VMEM.
    vmem_limit = int(min(max(32 * 1024 * 1024, 2 * est_bytes),
                         int(vmem_cap * 0.9)))

    kernel = functools.partial(
        _sdpa_kernel, scale=scale,
        dropout_rate=float(dropout_rate) if use_dropout else 0.0,
        return_attn=return_attn)

    in_specs = [
        pl.BlockSpec((Gt, Lqt, Dk), lambda g, qi, seed_ref: (g, qi, 0)),
        # K/V index maps ignore the query-tile axis -> their blocks are reused
        # (no re-DMA) across consecutive inner grid steps.
        pl.BlockSpec((Gt, L, Dk), lambda g, qi, seed_ref: (g, 0, 0)),
        pl.BlockSpec((Gt, L, Dv), lambda g, qi, seed_ref: (g, 0, 0)),
    ]
    out_specs = [pl.BlockSpec((Gt, Lqt, Dv), lambda g, qi, seed_ref: (g, qi, 0))]
    out_shapes = [jax.ShapeDtypeStruct((G, L, Dv), query.dtype)]
    if return_attn:
        out_specs.append(pl.BlockSpec((Gt, Lqt, L),
                                      lambda g, qi, seed_ref: (g, qi, 0)))
        out_shapes.append(jax.ShapeDtypeStruct((G, L, L), query.dtype))

    grid_spec = pltpu.PrefetchScalarGridSpec(
        num_scalar_prefetch=1,
        grid=grid,
        in_specs=in_specs,
        out_specs=tuple(out_specs),
    )

    outs = pl.pallas_call(
        kernel,
        out_shape=tuple(out_shapes),
        grid_spec=grid_spec,
        compiler_params=pltpu.CompilerParams(
            # Both grid axes are fully independent (per-step PRNG seeding in
            # the dropout path) -> let megacore chips (v7x) shard the grid.
            dimension_semantics=("parallel", "parallel"),
            vmem_limit_bytes=vmem_limit,
        ),
    )(jnp.asarray([seed], dtype=jnp.int32), q, k, v)

    out = outs[0].reshape(B, H, L, Dv)
    p_attn = outs[1].reshape(B, H, L, L) if return_attn else None
    return out, p_attn


if __name__ == "__main__":
    # Small shapes consistent with the module: (batch, n_heads, max_len, d).
    B, H, L, Dk, Dv = 2, 4, 8, 32, 32
    key0 = jax.random.PRNGKey(0)
    kq, kk, kv = jax.random.split(key0, 3)
    q = jax.random.normal(kq, (B, H, L, Dk), dtype=jnp.float32)
    k = jax.random.normal(kk, (B, H, L, Dk), dtype=jnp.float32)
    v = jax.random.normal(kv, (B, H, L, Dv), dtype=jnp.float32)

    # dropout=None path of the PyTorch forward (deterministic, checkable).
    out, p_attn = scaled_dot_product_attention(q, k, v, dropout_rate=0.0,
                                               training=False)
    out, p_attn = jax.block_until_ready((out, p_attn))

    # Pure-JAX reference.
    scores = jnp.einsum("bhqd,bhkd->bhqk", q, k, precision="highest") / math.sqrt(Dk)
    p_ref = jax.nn.softmax(scores, axis=-1)
    out_ref = jnp.einsum("bhqk,bhkd->bhqd", p_ref, v, precision="highest")

    assert out.shape == (B, H, L, Dv)
    assert p_attn.shape == (B, H, L, L)
    assert jnp.allclose(p_attn, p_ref, rtol=1e-4, atol=1e-4), "p_attn mismatch"
    assert jnp.allclose(out, out_ref, rtol=1e-4, atol=1e-4), "output mismatch"

    print("KERNEL_OK")
</pallas_src>

<mosaic_0001>
module attributes {stable_mosaic.version = 11 : i64} {
  func.func @_sdpa_kernel(%arg0: i32, %arg1: i32, %arg2: memref<1xi32, #tpu.memory_space<smem>>, %arg3: memref<4x8x32xf32, #tpu.memory_space<vmem>>, %arg4: memref<4x8x32xf32, #tpu.memory_space<vmem>>, %arg5: memref<4x8x32xf32, #tpu.memory_space<vmem>>, %arg6: memref<4x8x32xf32, #tpu.memory_space<vmem>>, %arg7: memref<4x8x8xf32, #tpu.memory_space<vmem>>) attributes {dimension_semantics = [#tpu.dimension_semantics<parallel>, #tpu.dimension_semantics<parallel>], iteration_bounds = array<i64: 2, 1>, scalar_prefetch = 1 : i64, scratch_operands = 0 : i64, tpu.core_type = #tpu.core_type<tc>, window_params = [{transform_indices = @transform_0, window_bounds = array<i64: 4, 8, 32>}, {transform_indices = @transform_1, window_bounds = array<i64: 4, 8, 32>}, {transform_indices = @transform_2, window_bounds = array<i64: 4, 8, 32>}, {transform_indices = @transform_3, window_bounds = array<i64: 4, 8, 32>}, {transform_indices = @transform_4, window_bounds = array<i64: 4, 8, 8>}]} {
    %c0 = arith.constant 0 : index
    %c0_0 = arith.constant 0 : index
    %c0_1 = arith.constant 0 : index
    %0 = vector.load %arg3[%c0, %c0_0, %c0_1] : memref<4x8x32xf32, #tpu.memory_space<vmem>>, vector<4x8x32xf32>
    %cst = arith.constant 0.176776692 : f32
    %1 = vector.broadcast %cst : f32 to vector<4x8x32xf32>
    %2 = arith.mulf %0, %1 : vector<4x8x32xf32>
    %c0_2 = arith.constant 0 : index
    %c0_3 = arith.constant 0 : index
    %c0_4 = arith.constant 0 : index
    %3 = vector.load %arg4[%c0_2, %c0_3, %c0_4] : memref<4x8x32xf32, #tpu.memory_space<vmem>>, vector<4x8x32xf32>
    "tpu.trace_start"() <{level = 10 : i32, message = "gqd,gkd->gqk"}> : () -> ()
    %cst_5 = arith.constant dense<0.000000e+00> : vector<4x8x8xf32>
    %4 = tpu.matmul %2, %3, %cst_5 {dimension_numbers = #tpu.dot_dimension_numbers<[2], [2], [1], [1], [0, 0, 0, 1, 1, 1], [0], [0]>} : vector<4x8x32xf32>, vector<4x8x32xf32>, vector<4x8x8xf32> -> vector<4x8x8xf32>
    "tpu.trace_stop"() : () -> ()
    %cst_6 = arith.constant dense<0xFF800000> : vector<4x8xf32>
    %5 = vector.multi_reduction <maximumf>, %4, %cst_6 [2] : vector<4x8x8xf32> to vector<4x8xf32>
    %6 = vector.shape_cast %5 : vector<4x8xf32> to vector<4x8x1xf32>
    %7 = vector.broadcast %6 : vector<4x8x1xf32> to vector<4x8x8xf32>
    %8 = arith.subf %4, %7 : vector<4x8x8xf32>
    %9 = math.exp %8 : vector<4x8x8xf32>
    %cst_7 = arith.constant dense<0.000000e+00> : vector<4x8xf32>
    %10 = vector.multi_reduction <add>, %9, %cst_7 [2] : vector<4x8x8xf32> to vector<4x8xf32>
    %11 = vector.shape_cast %10 : vector<4x8xf32> to vector<4x8x1xf32>
    %12 = tpu.reciprocal %11 : vector<4x8x1xf32> -> vector<4x8x1xf32>
    %13 = vector.broadcast %12 : vector<4x8x1xf32> to vector<4x8x8xf32>
    %14 = arith.mulf %9, %13 : vector<4x8x8xf32>
    %c0_8 = arith.constant 0 : index
    %c0_9 = arith.constant 0 : index
    %c0_10 = arith.constant 0 : index
    %15 = vector.load %arg5[%c0_8, %c0_9, %c0_10] : memref<4x8x32xf32, #tpu.memory_space<vmem>>, vector<4x8x32xf32>
    "tpu.trace_start"() <{level = 10 : i32, message = "gqk,gkd->gqd"}> : () -> ()
    %cst_11 = arith.constant dense<0.000000e+00> : vector<4x8x32xf32>
    %16 = tpu.matmul %14, %15, %cst_11 {dimension_numbers = #tpu.dot_dimension_numbers<[2], [1], [1], [2], [0, 0, 0, 1, 1, 2], [0], [0]>} : vector<4x8x8xf32>, vector<4x8x32xf32>, vector<4x8x32xf32> -> vector<4x8x32xf32>
    "tpu.trace_stop"() : () -> ()
    %c0_12 = arith.constant 0 : index
    %c0_13 = arith.constant 0 : index
    %c0_14 = arith.constant 0 : index
    %17 = vector.load %arg6[%c0_12, %c0_13, %c0_14] : memref<4x8x32xf32, #tpu.memory_space<vmem>>, vector<4x8x32xf32>
    tpu.vector_store %arg6[%c0_12, %c0_13, %c0_14], %16 {strides = array<i32>} : memref<4x8x32xf32, #tpu.memory_space<vmem>>, vector<4x8x32xf32>,
    %c0_15 = arith.constant 0 : index
    %c0_16 = arith.constant 0 : index
    %c0_17 = arith.constant 0 : index
    %18 = vector.load %arg7[%c0_15, %c0_16, %c0_17] : memref<4x8x8xf32, #tpu.memory_space<vmem>>, vector<4x8x8xf32>
    tpu.vector_store %arg7[%c0_15, %c0_16, %c0_17], %14 {strides = array<i32>} : memref<4x8x8xf32, #tpu.memory_space<vmem>>, vector<4x8x8xf32>,
    return
  }
  func.func @transform_0(%arg0: i32, %arg1: i32, %arg2: memref<1xi32, #tpu.memory_space<smem>>) -> (i32, i32, i32) {
    %c0_i32 = arith.constant 0 : i32
    %c0_i32_0 = arith.constant 0 : i32
    return %arg0, %arg1, %c0_i32 : i32, i32, i32
  }
  func.func @transform_1(%arg0: i32, %arg1: i32, %arg2: memref<1xi32, #tpu.memory_space<smem>>) -> (i32, i32, i32) {
    %c0_i32 = arith.constant 0 : i32
    %c0_i32_0 = arith.constant 0 : i32
    %c0_i32_1 = arith.constant 0 : i32
    return %arg0, %c0_i32, %c0_i32_0 : i32, i32, i32
  }
  func.func @transform_2(%arg0: i32, %arg1: i32, %arg2: memref<1xi32, #tpu.memory_space<smem>>) -> (i32, i32, i32) {
    %c0_i32 = arith.constant 0 : i32
    %c0_i32_0 = arith.constant 0 : i32
    %c0_i32_1 = arith.constant 0 : i32
    return %arg0, %c0_i32, %c0_i32_0 : i32, i32, i32
  }
  func.func @transform_3(%arg0: i32, %arg1: i32, %arg2: memref<1xi32, #tpu.memory_space<smem>>) -> (i32, i32, i32) {
    %c0_i32 = arith.constant 0 : i32
    %c0_i32_0 = arith.constant 0 : i32
    return %arg0, %arg1, %c0_i32 : i32, i32, i32
  }
  func.func @transform_4(%arg0: i32, %arg1: i32, %arg2: memref<1xi32, #tpu.memory_space<smem>>) -> (i32, i32, i32) {
    %c0_i32 = arith.constant 0 : i32
    %c0_i32_0 = arith.constant 0 : i32
    return %arg0, %arg1, %c0_i32 : i32, i32, i32
  }
}

</mosaic_0001>

<llo_original>
// kernel: tpu_custom_call.1
$region0: #{tpu_custom_call.1}
  #allocation0 [shape = 'u32[]', space=smem, size = 0x4, offset = 0x4, fixed_abs, tag = 'smem constant byte address 0x4 - core index']
  #allocation1 [shape = 'u32[144,128]{1,0:T(1,128)}', space=vmem, size = 0x12000, scoped, tag = 'internal scratch']
  #allocation2 [shape = 's32[1]{0}', space=sflag, size = 0x4, scoped, tag = 'scoped memory for tpu_custom_call.1']
  #allocation3 [shape = 's32[1]{0:T(128)S(6)}', space=smem, size = 0x200, scoped, tag = 'prefetched SMEM operand 0']
  %s0 = inlined_call_operand.<no memory space> [shape: s32[1], index: 0, kind: input, shape index: {}]
  %s1 = inlined_call_operand.hbm [shape: f32[8,8,32], index: 1, kind: input, shape index: {}]
  %s2 = inlined_call_operand.hbm [shape: f32[8,8,32], index: 2, kind: input, shape index: {}]
  %s3 = inlined_call_operand.hbm [shape: f32[8,8,32], index: 3, kind: input, shape index: {}]
  %s4 = inlined_call_operand.hbm [shape: f32[8,8,32], index: 4, kind: output, shape index: {0}]
  %s5 = inlined_call_operand.hbm [shape: f32[8,8,8], index: 5, kind: output, shape index: {1}]
  %6 = xla_tuple %s4, %s5
  %s7 = sld [smem:[#allocation0]]
  $region65: #{tpu_custom_call.1} parent=0
    _
  %s9 = ssub.s32 1, %s7
  %s10 = scalar_select 0, %s9, %s7
  %11 = sst [smem:[#allocation3]] %s0
  $region1: #{tpu_custom_call.1} parent=0
    #allocation4 [shape = 'u8[32768]{0}', space=vmem, size = 0x8000, scoped, tag = 'input window, operand 1']
    #allocation5 [shape = 's32[2]{0}', space=sflag, size = 0x8, scoped, tag = 'scoped memory for tpu_custom_call.1']
    #allocation6 [shape = 's32[2]{0}', space=sflag, size = 0x8, scoped, tag = 'scoped memory for tpu_custom_call.1']
    #allocation7 [shape = 'u8[32768]{0}', space=vmem, size = 0x8000, scoped, tag = 'input window, operand 2']
    #allocation8 [shape = 's32[2]{0}', space=sflag, size = 0x8, scoped, tag = 'scoped memory for tpu_custom_call.1']
    #allocation9 [shape = 'u8[32768]{0}', space=vmem, size = 0x8000, scoped, tag = 'input window, operand 3']
    #allocation10 [shape = 'u8[32768]{0}', space=vmem, size = 0x8000, scoped, tag = 'output window, operand 0']
    #allocation11 [shape = 'u8[32768]{0}', space=vmem, size = 0x8000, scoped, tag = 'output window, operand 1']
    #allocation12 [shape = 's32[2]{0}', space=sflag, size = 0x8, scoped, tag = 'scoped memory for tpu_custom_call.1']
    %12 = vsyncpa [#allocation5], 0
    %s13 = scalar_lea.sflag [#allocation5], 1
    %14 = vsyncpa %s13, 0
    %15 = vsyncpa [#allocation8], 0
    %s16 = scalar_lea.sflag [#allocation8], 1
    %17 = vsyncpa %s16, 0
    %18 = vsyncpa [#allocation6], 0
    %s19 = scalar_lea.sflag [#allocation6], 1
    %20 = vsyncpa %s19, 0
    %21 = vsyncpa [#allocation12], 0
    %s22 = scalar_lea.sflag [#allocation12], 1
    %23 = vsyncpa %s22, 0
    loop: start=0, step=1, limit=4
    $region2: #{tpu_custom_call.1} parent=1 // loop_pre_header
      _
    $region3: #{tpu_custom_call.1} parent=1 // loop_header
      %s25 = sphi 0, %s29
      %p26 = scmp.ge.s32.totalorder %s25, 4
      %s32 = sphi 0, %s44
      %s33 = sphi 0, %s40
      %s34 = sphi 0, %s32
      %s35 = sphi 0, %s33
      %s36 = sphi 0, %s34
      %s37 = sphi 0, %s35
      %s49 = sphi 0, %s51
      %s52 = sphi 0, %s49
      %s53 = sphi 0, %s52
      %s69 = sphi 0, %s53
      %s75 = sphi 0, %s77
      %s78 = sphi 0, %s75
      %s79 = sphi 0, %s78
      %s95 = sphi 0, %s79
      %s101 = sphi 0, %s103
      %s104 = sphi 0, %s101
      %s105 = sphi 0, %s104
      %s121 = sphi 0, %s105
      %s129 = sphi 0, %s131
      %s132 = sphi 0, %s129
      %s133 = sphi 0, %s132
      %s149 = sphi 0, %s133
      %s157 = sphi 0, %s159
      %s160 = sphi 0, %s157
      %s161 = sphi 0, %s160
      %s177 = sphi 0, %s161
    $region4: #{tpu_custom_call.1} parent=1 // loop_header_branch
      %28 = sbr.rel (%p26) target = $region8
    $region5: #{tpu_custom_call.1} parent=1 // loop_body
      %s30 = ssub.s32 %s25, 1
      %s31 = ssub.s32 %s25, 2
      %s38 = sadd.s32 1, %s33
      %p39 = scmp.ge.s32.totalorder %s38, 1
      %s40 = scalar_select %p39, 0, %s38
      %s41 = sadd.s32 1, %s32
      %s42 = scalar_select %p39, %s41, %s32
      %p43 = scmp.ge.s32.totalorder %s42, 2
      %s44 = scalar_select %p43, 0, %s42
      %s45 = ssub.s32 %s32, %s44
      %s46 = ssub.s32 %s33, %s40
      %s47 = sor.u32 %s45, %s46
      %p48 = scmp.eq.s32.totalorder %s47, 0
      %s50 = sadd.s32 %s49, 1
      %s51 = scalar_select %p48, %s49, %s50
      %p54 = pneg %p48
      %p55 = scmp.eq.s32.totalorder %s25, 1
      %p56 = por %p54, %p55
      %p57 = scmp.ne.s32.totalorder %s49, %s52
      %p58 = scmp.eq.s32.totalorder %s25, 0
      %p59 = por %p57, %p58
      %p60 = scmp.ne.s32.totalorder %s49, %s52
      %p61 = scmp.eq.s32.totalorder %s30, 1
      %p62 = por %p60, %p61
      %p63 = scmp.ne.s32.totalorder %s52, %s53
      %p64 = scmp.eq.s32.totalorder %s30, 0
      %p65 = por %p63, %p64
      %p66 = scmp.ne.s32.totalorder %s52, %s53
      %p67 = scmp.eq.s32.totalorder %s31, 1
      %p68 = por %p66, %p67
      %p70 = scmp.ne.s32.totalorder %s53, %s69
      %p71 = scmp.eq.s32.totalorder %s31, 0
      %p72 = por %p70, %p71
      %s73 = ssub.s32 %s32, %s44
      %p74 = scmp.eq.s32.totalorder %s73, 0
      %s76 = sadd.s32 %s75, 1
      %s77 = scalar_select %p74, %s75, %s76
      %p80 = pneg %p74
      %p81 = scmp.eq.s32.totalorder %s25, 1
      %p82 = por %p80, %p81
      %p83 = scmp.ne.s32.totalorder %s75, %s78
      %p84 = scmp.eq.s32.totalorder %s25, 0
      %p85 = por %p83, %p84
      %p86 = scmp.ne.s32.totalorder %s75, %s78
      %p87 = scmp.eq.s32.totalorder %s30, 1
      %p88 = por %p86, %p87
      %p89 = scmp.ne.s32.totalorder %s78, %s79
      %p90 = scmp.eq.s32.totalorder %s30, 0
      %p91 = por %p89, %p90
      %p92 = scmp.ne.s32.totalorder %s78, %s79
      %p93 = scmp.eq.s32.totalorder %s31, 1
      %p94 = por %p92, %p93
      %p96 = scmp.ne.s32.totalorder %s79, %s95
      %p97 = scmp.eq.s32.totalorder %s31, 0
      %p98 = por %p96, %p97
      %s99 = ssub.s32 %s32, %s44
      %p100 = scmp.eq.s32.totalorder %s99, 0
      %s102 = sadd.s32 %s101, 1
      %s103 = scalar_select %p100, %s101, %s102
      %p106 = pneg %p100
      %p107 = scmp.eq.s32.totalorder %s25, 1
      %p108 = por %p106, %p107
      %p109 = scmp.ne.s32.totalorder %s101, %s104
      %p110 = scmp.eq.s32.totalorder %s25, 0
      %p111 = por %p109, %p110
      %p112 = scmp.ne.s32.totalorder %s101, %s104
      %p113 = scmp.eq.s32.totalorder %s30, 1
      %p114 = por %p112, %p113
      %p115 = scmp.ne.s32.totalorder %s104, %s105
      %p116 = scmp.eq.s32.totalorder %s30, 0
      %p117 = por %p115, %p116
      %p118 = scmp.ne.s32.totalorder %s104, %s105
      %p119 = scmp.eq.s32.totalorder %s31, 1
      %p120 = por %p118, %p119
      %p122 = scmp.ne.s32.totalorder %s105, %s121
      %p123 = scmp.eq.s32.totalorder %s31, 0
      %p124 = por %p122, %p123
      %s125 = ssub.s32 %s32, %s44
      %s126 = ssub.s32 %s33, %s40
      %s127 = sor.u32 %s125, %s126
      %p128 = scmp.eq.s32.totalorder %s127, 0
      %s130 = sadd.s32 %s129, 1
      %s131 = scalar_select %p128, %s129, %s130
      %p134 = pneg %p128
      %p135 = scmp.eq.s32.totalorder %s25, 1
      %p136 = por %p134, %p135
      %p137 = scmp.ne.s32.totalorder %s129, %s132
      %p138 = scmp.eq.s32.totalorder %s25, 0
      %p139 = por %p137, %p138
      %p140 = scmp.ne.s32.totalorder %s129, %s132
      %p141 = scmp.eq.s32.totalorder %s30, 1
      %p142 = por %p140, %p141
      %p143 = scmp.ne.s32.totalorder %s132, %s133
      %p144 = scmp.eq.s32.totalorder %s30, 0
      %p145 = por %p143, %p144
      %p146 = scmp.ne.s32.totalorder %s132, %s133
      %p147 = scmp.eq.s32.totalorder %s31, 1
      %p148 = por %p146, %p147
      %p150 = scmp.ne.s32.totalorder %s133, %s149
      %p151 = scmp.eq.s32.totalorder %s31, 0
      %p152 = por %p150, %p151
      %s153 = ssub.s32 %s32, %s44
      %s154 = ssub.s32 %s33, %s40
      %s155 = sor.u32 %s153, %s154
      %p156 = scmp.eq.s32.totalorder %s155, 0
      %s158 = sadd.s32 %s157, 1
      %s159 = scalar_select %p156, %s157, %s158
      %p162 = pneg %p156
      %p163 = scmp.eq.s32.totalorder %s25, 1
      %p164 = por %p162, %p163
      %p165 = scmp.ne.s32.totalorder %s157, %s160
      %p166 = scmp.eq.s32.totalorder %s25, 0
      %p167 = por %p165, %p166
      %p168 = scmp.ne.s32.totalorder %s157, %s160
      %p169 = scmp.eq.s32.totalorder %s30, 1
      %p170 = por %p168, %p169
      %p171 = scmp.ne.s32.totalorder %s160, %s161
      %p172 = scmp.eq.s32.totalorder %s30, 0
      %p173 = por %p171, %p172
      %p174 = scmp.ne.s32.totalorder %s160, %s161
      %p175 = scmp.eq.s32.totalorder %s31, 1
      %p176 = por %p174, %p175
      %p178 = scmp.ne.s32.totalorder %s161, %s177
      %p179 = scmp.eq.s32.totalorder %s31, 0
      %p180 = por %p178, %p179
      %p181 = scmp.le.s32.totalorder 1, %s25
      %p182 = scmp.lt.s32.totalorder %s25, 3
      %p183 = pnand %p181, %p182
      %p184 = pneg %p183
      // Predicated region
      $region9: #{tpu_custom_call.1} parent=5 // pred_check
        _
      $region10: #{tpu_custom_call.1} parent=5 // pred_check_branch
        %186 = sbr.rel (%p183) target = $region12
      $region11: #{tpu_custom_call.1} parent=5 // pred_region
        %s187 = ssub.s32 %s25, 1
      $region12: #{tpu_custom_call.1} parent=5 // pred_fallthru
        _
      %p188 = scmp.lt.s32.totalorder %s25, 2
      // Predicated region
      $region13: #{tpu_custom_call.1} parent=5 // pred_check
        %p189 = pneg %p188
      $region14: #{tpu_custom_call.1} parent=5 // pred_check_branch
        %191 = sbr.rel (%p189) target = $region16
      $region15: #{tpu_custom_call.1} parent=5 // pred_region
        // Predicated region
        $region17: #{tpu_custom_call.1} parent=15 // pred_check
          %p192 = pneg %p59
        $region18: #{tpu_custom_call.1} parent=15 // pred_check_branch
          %194 = sbr.rel (%p192) target = $region20
        $region19: #{tpu_custom_call.1} parent=15 // pred_region
          %s195 = sand.u32 %s49, 1
          %s196 = scalar_lea.sflag [#allocation5], %s195
          %s197 = sand.u32 %s49, 1
          %s198 = smul.addr %s197, 32
          %s199 = scalar_lea.vmem [#allocation4], %s198
          %s200 = smul.u32 4, %s32
          %s202 = ssub.s32 512, 512
          %203 = vsyncadd %s196, %s202
          %s204 = sadd.s32 %s33, %s200
          %s205 = smul.addr %s204, 128
          %s206 = scalar_lea.hbm %s1, %s205
          %s207 = sshll.u32 %s199, 4
          %s208 = int_to_ptr.vmem [resolvable:$true] %s207
          %213 = dma.hbm_to_vmem [thread:$0]  %s206, 512, %s208, %s196, 128, 128, 8
        $region20: #{tpu_custom_call.1} parent=15 // pred_fallthru
          _
        // Predicated region
        $region21: #{tpu_custom_call.1} parent=15 // pred_check
          %p214 = pneg %p85
        $region22: #{tpu_custom_call.1} parent=15 // pred_check_branch
          %216 = sbr.rel (%p214) target = $region24
        $region23: #{tpu_custom_call.1} parent=15 // pred_region
          %s217 = sand.u32 %s25, 1
          %s218 = scalar_lea.sflag [#allocation8], %s217
          %s219 = sand.u32 %s75, 1
          %s220 = smul.addr %s219, 32
          %s221 = scalar_lea.vmem [#allocation7], %s220
          %s222 = smul.u32 4, %s32
          %s224 = ssub.s32 512, 512
          %225 = vsyncadd %s218, %s224
          %s226 = smul.addr %s222, 128
          %s227 = scalar_lea.hbm %s2, %s226
          %s228 = sshll.u32 %s221, 4
          %s229 = int_to_ptr.vmem [resolvable:$true] %s228
          %234 = dma.hbm_to_vmem [thread:$0]  %s227, 512, %s229, %s218, 128, 128, 8
        $region24: #{tpu_custom_call.1} parent=15 // pred_fallthru
          _
        // Predicated region
        $region25: #{tpu_custom_call.1} parent=15 // pred_check
          %p235 = pneg %p111
        $region26: #{tpu_custom_call.1} parent=15 // pred_check_branch
          %237 = sbr.rel (%p235) target = $region28
        $region27: #{tpu_custom_call.1} parent=15 // pred_region
          %s238 = sand.u32 %s25, 1
          %s239 = scalar_lea.sflag [#allocation8], %s238
          %s240 = sand.u32 %s101, 1
          %s241 = smul.addr %s240, 32
          %s242 = scalar_lea.vmem [#allocation9], %s241
          %s243 = smul.u32 4, %s32
          %s245 = ssub.s32 512, 512
          %246 = vsyncadd %s239, %s245
          %s247 = smul.addr %s243, 128
          %s248 = scalar_lea.hbm %s3, %s247
          %s249 = sshll.u32 %s242, 4
          %s250 = int_to_ptr.vmem [resolvable:$true] %s249
          %255 = dma.hbm_to_vmem [thread:$0]  %s248, 512, %s250, %s239, 128, 128, 8
        $region28: #{tpu_custom_call.1} parent=15 // pred_fallthru
          _
      $region16: #{tpu_custom_call.1} parent=5 // pred_fallthru
        _
      %p256 = scmp.le.s32.totalorder 1, %s25
      %p257 = scmp.lt.s32.totalorder %s25, 3
      %p258 = pnand %p256, %p257
      %p259 = pneg %p258
      // Predicated region
      $region29: #{tpu_custom_call.1} parent=5 // pred_check
        _
      $region30: #{tpu_custom_call.1} parent=5 // pred_check_branch
        %261 = sbr.rel (%p258) target = $region32
      $region31: #{tpu_custom_call.1} parent=5 // pred_region
        %s262 = ssub.s32 %s25, 1
        %s263 = sand.u32 %s52, 1
        %s264 = scalar_lea.sflag [#allocation5], %s263
        %s265 = sand.u32 %s52, 1
        %s266 = smul.addr %s265, 32
        %s267 = scalar_lea.vmem [#allocation4], %s266
        // Predicated region
        $region33: #{tpu_custom_call.1} parent=31 // pred_check
          %p268 = pneg %p65
        $region34: #{tpu_custom_call.1} parent=31 // pred_check_branch
          %270 = sbr.rel (%p268) target = $region36
        $region35: #{tpu_custom_call.1} parent=31 // pred_region
          %271 = dma.done %s264, 512
        $region36: #{tpu_custom_call.1} parent=31 // pred_fallthru
          _
        %s272 = sand.u32 %s30, 1
        %s273 = scalar_lea.sflag [#allocation8], %s272
        %s274 = sand.u32 %s78, 1
        %s275 = smul.addr %s274, 32
        %s276 = scalar_lea.vmem [#allocation7], %s275
        // Predicated region
        $region37: #{tpu_custom_call.1} parent=31 // pred_check
          %p277 = pneg %p91
        $region38: #{tpu_custom_call.1} parent=31 // pred_check_branch
          %279 = sbr.rel (%p277) target = $region40
        $region39: #{tpu_custom_call.1} parent=31 // pred_region
          %280 = dma.done %s273, 512
        $region40: #{tpu_custom_call.1} parent=31 // pred_fallthru
          _
        %s281 = sand.u32 %s30, 1
        %s282 = scalar_lea.sflag [#allocation8], %s281
        %s283 = sand.u32 %s104, 1
        %s284 = smul.addr %s283, 32
        %s285 = scalar_lea.vmem [#allocation9], %s284
        // Predicated region
        $region41: #{tpu_custom_call.1} parent=31 // pred_check
          %p286 = pneg %p117
        $region42: #{tpu_custom_call.1} parent=31 // pred_check_branch
          %288 = sbr.rel (%p286) target = $region44
        $region43: #{tpu_custom_call.1} parent=31 // pred_region
          %289 = dma.done %s282, 512
        $region44: #{tpu_custom_call.1} parent=31 // pred_fallthru
          _
        %s290 = sand.u32 %s52, 1
        %s291 = scalar_lea.sflag [#allocation5], %s290
        %s292 = sand.u32 %s52, 1
        %s293 = smul.addr %s292, 32
        %s294 = scalar_lea.vmem [#allocation4], %s293
        %p295 = pneg %p65
        %p296 = pneg %p62
        %s297 = sand.u32 %s30, 1
        %s298 = scalar_lea.sflag [#allocation8], %s297
        %s299 = sand.u32 %s78, 1
        %s300 = smul.addr %s299, 32
        %s301 = scalar_lea.vmem [#allocation7], %s300
        %p302 = pneg %p91
        %p303 = pneg %p88
        %s304 = sand.u32 %s30, 1
        %s305 = scalar_lea.sflag [#allocation8], %s304
        %s306 = sand.u32 %s104, 1
        %s307 = smul.addr %s306, 32
        %s308 = scalar_lea.vmem [#allocation9], %s307
        %p309 = pneg %p117
        %p310 = pneg %p114
        %p311 = pneg %p145
        %p312 = pneg %p142
        %s313 = sand.u32 %s132, 1
        %s314 = scalar_lea.sflag [#allocation6], %s313
        %s315 = sand.u32 %s132, 1
        %s316 = smul.addr %s315, 32
        %s317 = scalar_lea.vmem [#allocation10], %s316
        %p318 = pneg %p173
        %p319 = pneg %p170
        %s320 = sand.u32 %s160, 1
        %s321 = scalar_lea.sflag [#allocation12], %s320
        %s322 = sand.u32 %s160, 1
        %s323 = smul.addr %s322, 32
        %s324 = scalar_lea.vmem [#allocation11], %s323
        %s325 = smul.u32 4, %s34
        %s326 = smul.u32 4, %s34
        %s327 = smul.u32 4, %s34
        %s328 = smul.u32 4, %s34
        %s329 = smul.u32 4, %s34
        %v330 = vld [vmem:[%s267] sm:$0xff]
        %v331 = vld [vmem:[%s267 + $0x8] sm:$0xff]
        %v332 = vld [vmem:[%s267 + $0x10] sm:$0xff]
        %v333 = vld [vmem:[%s267 + $0x18] sm:$0xff]
        %v334 = vmul.f32 %v330, 0.17677669
        %v335 = vmul.f32 %v331, 0.17677669
        %v336 = vmul.f32 %v332, 0.17677669
        %v337 = vmul.f32 %v333, 0.17677669
        %v338 = vld [vmem:[%s276] sm:$0xff]
        %v339 = vld [vmem:[%s276 + $0x8] sm:$0xff]
        %v340 = vld [vmem:[%s276 + $0x10] sm:$0xff]
        %v341 = vld [vmem:[%s276 + $0x18] sm:$0xff]
        %vm342 = vcmask 261120
        %v344 = vsel %vm342, %v334, 0
        %v347 = vsel %vm342, %v338, 0
        %349 = vmatprep.subr.mxu0 0.0
        %350 = vmatpush1.xpose.msra.mxu0 0.0
        %351 = vmatprep.subr.mxu0 0.0
        %352 = vmatpush1.xpose.msra.mxu0 0.0
        %353 = vmatprep.subr.mxu0 0.0
        %354 = vmatpush1.xpose.msra.mxu0 0.0
        %355 = vmatprep.subr.mxu0 0.0
        %356 = vmatpush1.xpose.msra.mxu0 0.0
        %357 = vmatprep.subr.mxu0 0.0
        %358 = vmatpush1.xpose.msra.mxu0 0.0
        %359 = vmatprep.subr.mxu0 0.0
        %360 = vmatpush1.xpose.msra.mxu0 0.0
        %361 = vmatprep.subr.mxu0 0.0
        %362 = vmatpush1.xpose.msra.mxu0 0.0
        %363 = vmatprep.subr.mxu0 0.0
        %364 = vmatpush1.xpose.msra.mxu0 0.0
        %365 = vmatprep.subr.mxu0 0.0
        %366 = vmatpush1.xpose.msra.mxu0 0.0
        %367 = vmatprep.subr.mxu0 0.0
        %368 = vmatpush1.xpose.msra.mxu0 0.0
        %369 = vmatprep.subr.mxu0 0.0
        %370 = vmatpush1.xpose.msra.mxu0 0.0
        %371 = vmatprep.subr.mxu0 0.0
        %372 = vmatpush1.xpose.msra.mxu0 0.0
        %373 = vmatprep.subr.mxu0 0.0
        %374 = vmatpush1.xpose.msra.mxu0 0.0
        %375 = vmatprep.subr.mxu0 0.0
        %376 = vmatpush1.xpose.msra.mxu0 0.0
        %377 = vmatprep.subr.mxu0 0.0
        %378 = vmatpush1.xpose.msra.mxu0 0.0
        %379 = vmatprep.subr.mxu0 0.0
        %380 = vmatpush1.xpose.msra.mxu0 %v347
        %381 = vmatprep.subr.mxu0 0.0
        %382 = vmatpush2.xpose.msra.mxu0 0.0
        %383 = vmatprep.subr.mxu0 0.0
        %384 = vmatpush2.xpose.msra.mxu0 0.0
        %385 = vmatprep.subr.mxu0 0.0
        %386 = vmatpush2.xpose.msra.mxu0 0.0
        %387 = vmatprep.subr.mxu0 0.0
        %388 = vmatpush2.xpose.msra.mxu0 0.0
        %389 = vmatprep.subr.mxu0 0.0
        %390 = vmatpush2.xpose.msra.mxu0 0.0
        %391 = vmatprep.subr.mxu0 0.0
        %392 = vmatpush2.xpose.msra.mxu0 0.0
        %393 = vmatprep.subr.mxu0 0.0
        %394 = vmatpush2.xpose.msra.mxu0 0.0
        %395 = vmatprep.subr.mxu0 0.0
        %396 = vmatpush2.xpose.msra.mxu0 0.0
        %397 = vmatprep.subr.mxu0 0.0
        %398 = vmatpush2.xpose.msra.mxu0 0.0
        %399 = vmatprep.subr.mxu0 0.0
        %400 = vmatpush2.xpose.msra.mxu0 0.0
        %401 = vmatprep.subr.mxu0 0.0
        %402 = vmatpush2.xpose.msra.mxu0 0.0
        %403 = vmatprep.subr.mxu0 0.0
        %404 = vmatpush2.xpose.msra.mxu0 0.0
        %405 = vmatprep.subr.mxu0 0.0
        %406 = vmatpush2.xpose.msra.mxu0 0.0
        %407 = vmatprep.subr.mxu0 0.0
        %408 = vmatpush2.xpose.msra.mxu0 0.0
        %409 = vmatprep.subr.mxu0 0.0
        %410 = vmatpush2.xpose.msra.mxu0 0.0
        %411 = vmatprep.subr.mxu0 0.0
        %412 = vmatpush2.xpose.msra.mxu0 0.0
        %413 = vmatprep.mubr.f32.mxu0 0.0
        %414 = vmatmul.mubr.f32.gmra.mxu0 %v344
        %v415 = vpop.f32.mrf.mxu0
        %v416 = vadd.f32 0.0, %v415
        %v417 = vpop.f32.mrf.mxu0
        %418 = vdwg.mxu0
        %v420 = vsel %vm342, %v335, 0
        %v423 = vsel %vm342, %v339, 0
        %425 = vmatprep.subr.mxu0 0.0
        %426 = vmatpush1.xpose.msra.mxu0 0.0
        %427 = vmatprep.subr.mxu0 0.0
        %428 = vmatpush1.xpose.msra.mxu0 0.0
        %429 = vmatprep.subr.mxu0 0.0
        %430 = vmatpush1.xpose.msra.mxu0 0.0
        %431 = vmatprep.subr.mxu0 0.0
        %432 = vmatpush1.xpose.msra.mxu0 0.0
        %433 = vmatprep.subr.mxu0 0.0
        %434 = vmatpush1.xpose.msra.mxu0 0.0
        %435 = vmatprep.subr.mxu0 0.0
        %436 = vmatpush1.xpose.msra.mxu0 0.0
        %437 = vmatprep.subr.mxu0 0.0
        %438 = vmatpush1.xpose.msra.mxu0 0.0
        %439 = vmatprep.subr.mxu0 0.0
        %440 = vmatpush1.xpose.msra.mxu0 0.0
        %441 = vmatprep.subr.mxu0 0.0
        %442 = vmatpush1.xpose.msra.mxu0 0.0
        %443 = vmatprep.subr.mxu0 0.0
        %444 = vmatpush1.xpose.msra.mxu0 0.0
        %445 = vmatprep.subr.mxu0 0.0
        %446 = vmatpush1.xpose.msra.mxu0 0.0
        %447 = vmatprep.subr.mxu0 0.0
        %448 = vmatpush1.xpose.msra.mxu0 0.0
        %449 = vmatprep.subr.mxu0 0.0
        %450 = vmatpush1.xpose.msra.mxu0 0.0
        %451 = vmatprep.subr.mxu0 0.0
        %452 = vmatpush1.xpose.msra.mxu0 0.0
        %453 = vmatprep.subr.mxu0 0.0
        %454 = vmatpush1.xpose.msra.mxu0 0.0
        %455 = vmatprep.subr.mxu0 0.0
        %456 = vmatpush1.xpose.msra.mxu0 %v423
        %457 = vmatprep.subr.mxu0 0.0
        %458 = vmatpush2.xpose.msra.mxu0 0.0
        %459 = vmatprep.subr.mxu0 0.0
        %460 = vmatpush2.xpose.msra.mxu0 0.0
        %461 = vmatprep.subr.mxu0 0.0
        %462 = vmatpush2.xpose.msra.mxu0 0.0
        %463 = vmatprep.subr.mxu0 0.0
        %464 = vmatpush2.xpose.msra.mxu0 0.0
        %465 = vmatprep.subr.mxu0 0.0
        %466 = vmatpush2.xpose.msra.mxu0 0.0
        %467 = vmatprep.subr.mxu0 0.0
        %468 = vmatpush2.xpose.msra.mxu0 0.0
        %469 = vmatprep.subr.mxu0 0.0
        %470 = vmatpush2.xpose.msra.mxu0 0.0
        %471 = vmatprep.subr.mxu0 0.0
        %472 = vmatpush2.xpose.msra.mxu0 0.0
        %473 = vmatprep.subr.mxu0 0.0
        %474 = vmatpush2.xpose.msra.mxu0 0.0
        %475 = vmatprep.subr.mxu0 0.0
        %476 = vmatpush2.xpose.msra.mxu0 0.0
        %477 = vmatprep.subr.mxu0 0.0
        %478 = vmatpush2.xpose.msra.mxu0 0.0
        %479 = vmatprep.subr.mxu0 0.0
        %480 = vmatpush2.xpose.msra.mxu0 0.0
        %481 = vmatprep.subr.mxu0 0.0
        %482 = vmatpush2.xpose.msra.mxu0 0.0
        %483 = vmatprep.subr.mxu0 0.0
        %484 = vmatpush2.xpose.msra.mxu0 0.0
        %485 = vmatprep.subr.mxu0 0.0
        %486 = vmatpush2.xpose.msra.mxu0 0.0
        %487 = vmatprep.subr.mxu0 0.0
        %488 = vmatpush2.xpose.msra.mxu0 0.0
        %489 = vmatprep.mubr.f32.mxu0 0.0
        %490 = vmatmul.mubr.f32.gmra.mxu0 %v420
        %v491 = vpop.f32.mrf.mxu0
        %v492 = vadd.f32 0.0, %v491
        %v493 = vpop.f32.mrf.mxu0
        %494 = vdwg.mxu0
        %v496 = vsel %vm342, %v336, 0
        %v499 = vsel %vm342, %v340, 0
        %501 = vmatprep.subr.mxu0 0.0
        %502 = vmatpush1.xpose.msra.mxu0 0.0
        %503 = vmatprep.subr.mxu0 0.0
        %504 = vmatpush1.xpose.msra.mxu0 0.0
        %505 = vmatprep.subr.mxu0 0.0
        %506 = vmatpush1.xpose.msra.mxu0 0.0
        %507 = vmatprep.subr.mxu0 0.0
        %508 = vmatpush1.xpose.msra.mxu0 0.0
        %509 = vmatprep.subr.mxu0 0.0
        %510 = vmatpush1.xpose.msra.mxu0 0.0
        %511 = vmatprep.subr.mxu0 0.0
        %512 = vmatpush1.xpose.msra.mxu0 0.0
        %513 = vmatprep.subr.mxu0 0.0
        %514 = vmatpush1.xpose.msra.mxu0 0.0
        %515 = vmatprep.subr.mxu0 0.0
        %516 = vmatpush1.xpose.msra.mxu0 0.0
        %517 = vmatprep.subr.mxu0 0.0
        %518 = vmatpush1.xpose.msra.mxu0 0.0
        %519 = vmatprep.subr.mxu0 0.0
        %520 = vmatpush1.xpose.msra.mxu0 0.0
        %521 = vmatprep.subr.mxu0 0.0
        %522 = vmatpush1.xpose.msra.mxu0 0.0
        %523 = vmatprep.subr.mxu0 0.0
        %524 = vmatpush1.xpose.msra.mxu0 0.0
        %525 = vmatprep.subr.mxu0 0.0
        %526 = vmatpush1.xpose.msra.mxu0 0.0
        %527 = vmatprep.subr.mxu0 0.0
        %528 = vmatpush1.xpose.msra.mxu0 0.0
        %529 = vmatprep.subr.mxu0 0.0
        %530 = vmatpush1.xpose.msra.mxu0 0.0
        %531 = vmatprep.subr.mxu0 0.0
        %532 = vmatpush1.xpose.msra.mxu0 %v499
        %533 = vmatprep.subr.mxu0 0.0
        %534 = vmatpush2.xpose.msra.mxu0 0.0
        %535 = vmatprep.subr.mxu0 0.0
        %536 = vmatpush2.xpose.msra.mxu0 0.0
        %537 = vmatprep.subr.mxu0 0.0
        %538 = vmatpush2.xpose.msra.mxu0 0.0
        %539 = vmatprep.subr.mxu0 0.0
        %540 = vmatpush2.xpose.msra.mxu0 0.0
        %541 = vmatprep.subr.mxu0 0.0
        %542 = vmatpush2.xpose.msra.mxu0 0.0
        %543 = vmatprep.subr.mxu0 0.0
        %544 = vmatpush2.xpose.msra.mxu0 0.0
        %545 = vmatprep.subr.mxu0 0.0
        %546 = vmatpush2.xpose.msra.mxu0 0.0
        %547 = vmatprep.subr.mxu0 0.0
        %548 = vmatpush2.xpose.msra.mxu0 0.0
        %549 = vmatprep.subr.mxu0 0.0
        %550 = vmatpush2.xpose.msra.mxu0 0.0
        %551 = vmatprep.subr.mxu0 0.0
        %552 = vmatpush2.xpose.msra.mxu0 0.0
        %553 = vmatprep.subr.mxu0 0.0
        %554 = vmatpush2.xpose.msra.mxu0 0.0
        %555 = vmatprep.subr.mxu0 0.0
        %556 = vmatpush2.xpose.msra.mxu0 0.0
        %557 = vmatprep.subr.mxu0 0.0
        %558 = vmatpush2.xpose.msra.mxu0 0.0
        %559 = vmatprep.subr.mxu0 0.0
        %560 = vmatpush2.xpose.msra.mxu0 0.0
        %561 = vmatprep.subr.mxu0 0.0
        %562 = vmatpush2.xpose.msra.mxu0 0.0
        %563 = vmatprep.subr.mxu0 0.0
        %564 = vmatpush2.xpose.msra.mxu0 0.0
        %565 = vmatprep.mubr.f32.mxu0 0.0
        %566 = vmatmul.mubr.f32.gmra.mxu0 %v496
        %v567 = vpop.f32.mrf.mxu0
        %v568 = vadd.f32 0.0, %v567
        %v569 = vpop.f32.mrf.mxu0
        %570 = vdwg.mxu0
        %v572 = vsel %vm342, %v337, 0
        %v575 = vsel %vm342, %v341, 0
        %577 = vmatprep.subr.mxu0 0.0
        %578 = vmatpush1.xpose.msra.mxu0 0.0
        %579 = vmatprep.subr.mxu0 0.0
        %580 = vmatpush1.xpose.msra.mxu0 0.0
        %581 = vmatprep.subr.mxu0 0.0
        %582 = vmatpush1.xpose.msra.mxu0 0.0
        %583 = vmatprep.subr.mxu0 0.0
        %584 = vmatpush1.xpose.msra.mxu0 0.0
        %585 = vmatprep.subr.mxu0 0.0
        %586 = vmatpush1.xpose.msra.mxu0 0.0
        %587 = vmatprep.subr.mxu0 0.0
        %588 = vmatpush1.xpose.msra.mxu0 0.0
        %589 = vmatprep.subr.mxu0 0.0
        %590 = vmatpush1.xpose.msra.mxu0 0.0
        %591 = vmatprep.subr.mxu0 0.0
        %592 = vmatpush1.xpose.msra.mxu0 0.0
        %593 = vmatprep.subr.mxu0 0.0
        %594 = vmatpush1.xpose.msra.mxu0 0.0
        %595 = vmatprep.subr.mxu0 0.0
        %596 = vmatpush1.xpose.msra.mxu0 0.0
        %597 = vmatprep.subr.mxu0 0.0
        %598 = vmatpush1.xpose.msra.mxu0 0.0
        %599 = vmatprep.subr.mxu0 0.0
        %600 = vmatpush1.xpose.msra.mxu0 0.0
        %601 = vmatprep.subr.mxu0 0.0
        %602 = vmatpush1.xpose.msra.mxu0 0.0
        %603 = vmatprep.subr.mxu0 0.0
        %604 = vmatpush1.xpose.msra.mxu0 0.0
        %605 = vmatprep.subr.mxu0 0.0
        %606 = vmatpush1.xpose.msra.mxu0 0.0
        %607 = vmatprep.subr.mxu0 0.0
        %608 = vmatpush1.xpose.msra.mxu0 %v575
        %609 = vmatprep.subr.mxu0 0.0
        %610 = vmatpush2.xpose.msra.mxu0 0.0
        %611 = vmatprep.subr.mxu0 0.0
        %612 = vmatpush2.xpose.msra.mxu0 0.0
        %613 = vmatprep.subr.mxu0 0.0
        %614 = vmatpush2.xpose.msra.mxu0 0.0
        %615 = vmatprep.subr.mxu0 0.0
        %616 = vmatpush2.xpose.msra.mxu0 0.0
        %617 = vmatprep.subr.mxu0 0.0
        %618 = vmatpush2.xpose.msra.mxu0 0.0
        %619 = vmatprep.subr.mxu0 0.0
        %620 = vmatpush2.xpose.msra.mxu0 0.0
        %621 = vmatprep.subr.mxu0 0.0
        %622 = vmatpush2.xpose.msra.mxu0 0.0
        %623 = vmatprep.subr.mxu0 0.0
        %624 = vmatpush2.xpose.msra.mxu0 0.0
        %625 = vmatprep.subr.mxu0 0.0
        %626 = vmatpush2.xpose.msra.mxu0 0.0
        %627 = vmatprep.subr.mxu0 0.0
        %628 = vmatpush2.xpose.msra.mxu0 0.0
        %629 = vmatprep.subr.mxu0 0.0
        %630 = vmatpush2.xpose.msra.mxu0 0.0
        %631 = vmatprep.subr.mxu0 0.0
        %632 = vmatpush2.xpose.msra.mxu0 0.0
        %633 = vmatprep.subr.mxu0 0.0
        %634 = vmatpush2.xpose.msra.mxu0 0.0
        %635 = vmatprep.subr.mxu0 0.0
        %636 = vmatpush2.xpose.msra.mxu0 0.0
        %637 = vmatprep.subr.mxu0 0.0
        %638 = vmatpush2.xpose.msra.mxu0 0.0
        %639 = vmatprep.subr.mxu0 0.0
        %640 = vmatpush2.xpose.msra.mxu0 0.0
        %641 = vmatprep.mubr.f32.mxu0 0.0
        %642 = vmatmul.mubr.f32.gmra.mxu0 %v572
        %v643 = vpop.f32.mrf.mxu0
        %v644 = vadd.f32 0.0, %v643
        %v645 = vpop.f32.mrf.mxu0
        %646 = vdwg.mxu0
        %vm647 = vcmask 64512
        %v648 = vsel %vm647, %v416, -inf
        %649 = vmax.xlane.f32.xlu0 %v648
        %v650 = vpop.xlane.xlu0 %649
        %v651 = vsel %vm647, %v492, -inf
        %652 = vmax.xlane.f32.xlu0 %v651
        %v653 = vpop.xlane.xlu0 %652
        %v654 = vsel %vm647, %v568, -inf
        %655 = vmax.xlane.f32.xlu0 %v654
        %v656 = vpop.xlane.xlu0 %655
        %v657 = vsel %vm647, %v644, -inf
        %658 = vmax.xlane.f32.xlu0 %v657
        %v659 = vpop.xlane.xlu0 %658
        %v660 = vsub.f32 %v416, %v650
        %v661 = vsub.f32 %v492, %v653
        %v662 = vsub.f32 %v568, %v656
        %v663 = vsub.f32 %v644, %v659
        %v664 = vmul.f32 %v660, 1.442695
        %v665 = vpow.pop %v664
        %v666 = vmul.f32 %v661, 1.442695
        %v667 = vpow.pop %v666
        %v668 = vmul.f32 %v662, 1.442695
        %v669 = vpow.pop %v668
        %v670 = vmul.f32 %v663, 1.442695
        %v671 = vpow.pop %v670
        %v672 = vsel %vm647, %v665, 0.0
        %673 = vadd.xlane.f32.xlu0 %v672
        %v674 = vpop.xlane.xlu0 %673
        %v675 = vsel %vm647, %v667, 0.0
        %676 = vadd.xlane.f32.xlu0 %v675
        %v677 = vpop.xlane.xlu0 %676
        %v678 = vsel %vm647, %v669, 0.0
        %679 = vadd.xlane.f32.xlu0 %v678
        %v680 = vpop.xlane.xlu0 %679
        %v681 = vsel %vm647, %v671, 0.0
        %682 = vadd.xlane.f32.xlu0 %v681
        %v683 = vpop.xlane.xlu0 %682
        %v684 = vrcp.pop %v674
        %v685 = vrcp.pop %v677
        %v686 = vrcp.pop %v680
        %v687 = vrcp.pop %v683
        %v688 = vmul.f32 %v665, %v684
        %v689 = vmul.f32 %v667, %v685
        %v690 = vmul.f32 %v669, %v686
        %v691 = vmul.f32 %v671, %v687
        %v692 = vld [vmem:[%s285] sm:$0xff]
        %v693 = vld [vmem:[%s285 + $0x8] sm:$0xff]
        %v694 = vld [vmem:[%s285 + $0x10] sm:$0xff]
        %v695 = vld [vmem:[%s285 + $0x18] sm:$0xff]
        %v697 = vsel %vm647, %v688, 0
        %699 = vmatprep.subr.mxu0 0.0
        %700 = vmatpush1.msra.mxu0 0.0
        %701 = vmatprep.subr.mxu0 0.0
        %702 = vmatpush1.msra.mxu0 0.0
        %703 = vmatprep.subr.mxu0 0.0
        %704 = vmatpush1.msra.mxu0 0.0
        %705 = vmatprep.subr.mxu0 0.0
        %706 = vmatpush1.msra.mxu0 0.0
        %707 = vmatprep.subr.mxu0 0.0
        %708 = vmatpush1.msra.mxu0 0.0
        %709 = vmatprep.subr.mxu0 0.0
        %710 = vmatpush1.msra.mxu0 0.0
        %711 = vmatprep.subr.mxu0 0.0
        %712 = vmatpush1.msra.mxu0 0.0
        %713 = vmatprep.subr.mxu0 0.0
        %714 = vmatpush1.msra.mxu0 0.0
        %715 = vmatprep.subr.mxu0 0.0
        %716 = vmatpush1.msra.mxu0 0.0
        %717 = vmatprep.subr.mxu0 0.0
        %718 = vmatpush1.msra.mxu0 0.0
        %719 = vmatprep.subr.mxu0 0.0
        %720 = vmatpush1.msra.mxu0 0.0
        %721 = vmatprep.subr.mxu0 0.0
        %722 = vmatpush1.msra.mxu0 0.0
        %723 = vmatprep.subr.mxu0 0.0
        %724 = vmatpush1.msra.mxu0 0.0
        %725 = vmatprep.subr.mxu0 0.0
        %726 = vmatpush1.msra.mxu0 0.0
        %727 = vmatprep.subr.mxu0 0.0
        %728 = vmatpush1.msra.mxu0 0.0
        %729 = vmatprep.subr.mxu0 0.0
        %730 = vmatpush1.msra.mxu0 %v692
        %731 = vmatprep.subr.mxu0 0.0
        %732 = vmatpush2.msra.mxu0 0.0
        %733 = vmatprep.subr.mxu0 0.0
        %734 = vmatpush2.msra.mxu0 0.0
        %735 = vmatprep.subr.mxu0 0.0
        %736 = vmatpush2.msra.mxu0 0.0
        %737 = vmatprep.subr.mxu0 0.0
        %738 = vmatpush2.msra.mxu0 0.0
        %739 = vmatprep.subr.mxu0 0.0
        %740 = vmatpush2.msra.mxu0 0.0
        %741 = vmatprep.subr.mxu0 0.0
        %742 = vmatpush2.msra.mxu0 0.0
        %743 = vmatprep.subr.mxu0 0.0
        %744 = vmatpush2.msra.mxu0 0.0
        %745 = vmatprep.subr.mxu0 0.0
        %746 = vmatpush2.msra.mxu0 0.0
        %747 = vmatprep.subr.mxu0 0.0
        %748 = vmatpush2.msra.mxu0 0.0
        %749 = vmatprep.subr.mxu0 0.0
        %750 = vmatpush2.msra.mxu0 0.0
        %751 = vmatprep.subr.mxu0 0.0
        %752 = vmatpush2.msra.mxu0 0.0
        %753 = vmatprep.subr.mxu0 0.0
        %754 = vmatpush2.msra.mxu0 0.0
        %755 = vmatprep.subr.mxu0 0.0
        %756 = vmatpush2.msra.mxu0 0.0
        %757 = vmatprep.subr.mxu0 0.0
        %758 = vmatpush2.msra.mxu0 0.0
        %759 = vmatprep.subr.mxu0 0.0
        %760 = vmatpush2.msra.mxu0 0.0
        %761 = vmatprep.subr.mxu0 0.0
        %762 = vmatpush2.msra.mxu0 0.0
        %763 = vmatprep.mubr.f32.mxu0 0.0
        %764 = vmatmul.mubr.f32.gmra.mxu0 %v697
        %v765 = vpop.f32.mrf.mxu0
        %v766 = vadd.f32 0.0, %v765
        %v767 = vpop.f32.mrf.mxu0
        %768 = vdwg.mxu0
        %v770 = vsel %vm647, %v689, 0
        %772 = vmatprep.subr.mxu0 0.0
        %773 = vmatpush1.msra.mxu0 0.0
        %774 = vmatprep.subr.mxu0 0.0
        %775 = vmatpush1.msra.mxu0 0.0
        %776 = vmatprep.subr.mxu0 0.0
        %777 = vmatpush1.msra.mxu0 0.0
        %778 = vmatprep.subr.mxu0 0.0
        %779 = vmatpush1.msra.mxu0 0.0
        %780 = vmatprep.subr.mxu0 0.0
        %781 = vmatpush1.msra.mxu0 0.0
        %782 = vmatprep.subr.mxu0 0.0
        %783 = vmatpush1.msra.mxu0 0.0
        %784 = vmatprep.subr.mxu0 0.0
        %785 = vmatpush1.msra.mxu0 0.0
        %786 = vmatprep.subr.mxu0 0.0
        %787 = vmatpush1.msra.mxu0 0.0
        %788 = vmatprep.subr.mxu0 0.0
        %789 = vmatpush1.msra.mxu0 0.0
        %790 = vmatprep.subr.mxu0 0.0
        %791 = vmatpush1.msra.mxu0 0.0
        %792 = vmatprep.subr.mxu0 0.0
        %793 = vmatpush1.msra.mxu0 0.0
        %794 = vmatprep.subr.mxu0 0.0
        %795 = vmatpush1.msra.mxu0 0.0
        %796 = vmatprep.subr.mxu0 0.0
        %797 = vmatpush1.msra.mxu0 0.0
        %798 = vmatprep.subr.mxu0 0.0
        %799 = vmatpush1.msra.mxu0 0.0
        %800 = vmatprep.subr.mxu0 0.0
        %801 = vmatpush1.msra.mxu0 0.0
        %802 = vmatprep.subr.mxu0 0.0
        %803 = vmatpush1.msra.mxu0 %v693
        %804 = vmatprep.subr.mxu0 0.0
        %805 = vmatpush2.msra.mxu0 0.0
        %806 = vmatprep.subr.mxu0 0.0
        %807 = vmatpush2.msra.mxu0 0.0
        %808 = vmatprep.subr.mxu0 0.0
        %809 = vmatpush2.msra.mxu0 0.0
        %810 = vmatprep.subr.mxu0 0.0
        %811 = vmatpush2.msra.mxu0 0.0
        %812 = vmatprep.subr.mxu0 0.0
        %813 = vmatpush2.msra.mxu0 0.0
        %814 = vmatprep.subr.mxu0 0.0
        %815 = vmatpush2.msra.mxu0 0.0
        %816 = vmatprep.subr.mxu0 0.0
        %817 = vmatpush2.msra.mxu0 0.0
        %818 = vmatprep.subr.mxu0 0.0
        %819 = vmatpush2.msra.mxu0 0.0
        %820 = vmatprep.subr.mxu0 0.0
        %821 = vmatpush2.msra.mxu0 0.0
        %822 = vmatprep.subr.mxu0 0.0
        %823 = vmatpush2.msra.mxu0 0.0
        %824 = vmatprep.subr.mxu0 0.0
        %825 = vmatpush2.msra.mxu0 0.0
        %826 = vmatprep.subr.mxu0 0.0
        %827 = vmatpush2.msra.mxu0 0.0
        %828 = vmatprep.subr.mxu0 0.0
        %829 = vmatpush2.msra.mxu0 0.0
        %830 = vmatprep.subr.mxu0 0.0
        %831 = vmatpush2.msra.mxu0 0.0
        %832 = vmatprep.subr.mxu0 0.0
        %833 = vmatpush2.msra.mxu0 0.0
        %834 = vmatprep.subr.mxu0 0.0
        %835 = vmatpush2.msra.mxu0 0.0
        %836 = vmatprep.mubr.f32.mxu0 0.0
        %837 = vmatmul.mubr.f32.gmra.mxu0 %v770
        %v838 = vpop.f32.mrf.mxu0
        %v839 = vadd.f32 0.0, %v838
        %v840 = vpop.f32.mrf.mxu0
        %841 = vdwg.mxu0
        %v843 = vsel %vm647, %v690, 0
        %845 = vmatprep.subr.mxu0 0.0
        %846 = vmatpush1.msra.mxu0 0.0
        %847 = vmatprep.subr.mxu0 0.0
        %848 = vmatpush1.msra.mxu0 0.0
        %849 = vmatprep.subr.mxu0 0.0
        %850 = vmatpush1.msra.mxu0 0.0
        %851 = vmatprep.subr.mxu0 0.0
        %852 = vmatpush1.msra.mxu0 0.0
        %853 = vmatprep.subr.mxu0 0.0
        %854 = vmatpush1.msra.mxu0 0.0
        %855 = vmatprep.subr.mxu0 0.0
        %856 = vmatpush1.msra.mxu0 0.0
        %857 = vmatprep.subr.mxu0 0.0
        %858 = vmatpush1.msra.mxu0 0.0
        %859 = vmatprep.subr.mxu0 0.0
        %860 = vmatpush1.msra.mxu0 0.0
        %861 = vmatprep.subr.mxu0 0.0
        %862 = vmatpush1.msra.mxu0 0.0
        %863 = vmatprep.subr.mxu0 0.0
        %864 = vmatpush1.msra.mxu0 0.0
        %865 = vmatprep.subr.mxu0 0.0
        %866 = vmatpush1.msra.mxu0 0.0
        %867 = vmatprep.subr.mxu0 0.0
        %868 = vmatpush1.msra.mxu0 0.0
        %869 = vmatprep.subr.mxu0 0.0
        %870 = vmatpush1.msra.mxu0 0.0
        %871 = vmatprep.subr.mxu0 0.0
        %872 = vmatpush1.msra.mxu0 0.0
        %873 = vmatprep.subr.mxu0 0.0
        %874 = vmatpush1.msra.mxu0 0.0
        %875 = vmatprep.subr.mxu0 0.0
        %876 = vmatpush1.msra.mxu0 %v694
        %877 = vmatprep.subr.mxu0 0.0
        %878 = vmatpush2.msra.mxu0 0.0
        %879 = vmatprep.subr.mxu0 0.0
        %880 = vmatpush2.msra.mxu0 0.0
        %881 = vmatprep.subr.mxu0 0.0
        %882 = vmatpush2.msra.mxu0 0.0
        %883 = vmatprep.subr.mxu0 0.0
        %884 = vmatpush2.msra.mxu0 0.0
        %885 = vmatprep.subr.mxu0 0.0
        %886 = vmatpush2.msra.mxu0 0.0
        %887 = vmatprep.subr.mxu0 0.0
        %888 = vmatpush2.msra.mxu0 0.0
        %889 = vmatprep.subr.mxu0 0.0
        %890 = vmatpush2.msra.mxu0 0.0
        %891 = vmatprep.subr.mxu0 0.0
        %892 = vmatpush2.msra.mxu0 0.0
        %893 = vmatprep.subr.mxu0 0.0
        %894 = vmatpush2.msra.mxu0 0.0
        %895 = vmatprep.subr.mxu0 0.0
        %896 = vmatpush2.msra.mxu0 0.0
        %897 = vmatprep.subr.mxu0 0.0
        %898 = vmatpush2.msra.mxu0 0.0
        %899 = vmatprep.subr.mxu0 0.0
        %900 = vmatpush2.msra.mxu0 0.0
        %901 = vmatprep.subr.mxu0 0.0
        %902 = vmatpush2.msra.mxu0 0.0
        %903 = vmatprep.subr.mxu0 0.0
        %904 = vmatpush2.msra.mxu0 0.0
        %905 = vmatprep.subr.mxu0 0.0
        %906 = vmatpush2.msra.mxu0 0.0
        %907 = vmatprep.subr.mxu0 0.0
        %908 = vmatpush2.msra.mxu0 0.0
        %909 = vmatprep.mubr.f32.mxu0 0.0
        %910 = vmatmul.mubr.f32.gmra.mxu0 %v843
        %v911 = vpop.f32.mrf.mxu0
        %v912 = vadd.f32 0.0, %v911
        %v913 = vpop.f32.mrf.mxu0
        %914 = vdwg.mxu0
        %v916 = vsel %vm647, %v691, 0
        %918 = vmatprep.subr.mxu0 0.0
        %919 = vmatpush1.msra.mxu0 0.0
        %920 = vmatprep.subr.mxu0 0.0
        %921 = vmatpush1.msra.mxu0 0.0
        %922 = vmatprep.subr.mxu0 0.0
        %923 = vmatpush1.msra.mxu0 0.0
        %924 = vmatprep.subr.mxu0 0.0
        %925 = vmatpush1.msra.mxu0 0.0
        %926 = vmatprep.subr.mxu0 0.0
        %927 = vmatpush1.msra.mxu0 0.0
        %928 = vmatprep.subr.mxu0 0.0
        %929 = vmatpush1.msra.mxu0 0.0
        %930 = vmatprep.subr.mxu0 0.0
        %931 = vmatpush1.msra.mxu0 0.0
        %932 = vmatprep.subr.mxu0 0.0
        %933 = vmatpush1.msra.mxu0 0.0
        %934 = vmatprep.subr.mxu0 0.0
        %935 = vmatpush1.msra.mxu0 0.0
        %936 = vmatprep.subr.mxu0 0.0
        %937 = vmatpush1.msra.mxu0 0.0
        %938 = vmatprep.subr.mxu0 0.0
        %939 = vmatpush1.msra.mxu0 0.0
        %940 = vmatprep.subr.mxu0 0.0
        %941 = vmatpush1.msra.mxu0 0.0
        %942 = vmatprep.subr.mxu0 0.0
        %943 = vmatpush1.msra.mxu0 0.0
        %944 = vmatprep.subr.mxu0 0.0
        %945 = vmatpush1.msra.mxu0 0.0
        %946 = vmatprep.subr.mxu0 0.0
        %947 = vmatpush1.msra.mxu0 0.0
        %948 = vmatprep.subr.mxu0 0.0
        %949 = vmatpush1.msra.mxu0 %v695
        %950 = vmatprep.subr.mxu0 0.0
        %951 = vmatpush2.msra.mxu0 0.0
        %952 = vmatprep.subr.mxu0 0.0
        %953 = vmatpush2.msra.mxu0 0.0
        %954 = vmatprep.subr.mxu0 0.0
        %955 = vmatpush2.msra.mxu0 0.0
        %956 = vmatprep.subr.mxu0 0.0
        %957 = vmatpush2.msra.mxu0 0.0
        %958 = vmatprep.subr.mxu0 0.0
        %959 = vmatpush2.msra.mxu0 0.0
        %960 = vmatprep.subr.mxu0 0.0
        %961 = vmatpush2.msra.mxu0 0.0
        %962 = vmatprep.subr.mxu0 0.0
        %963 = vmatpush2.msra.mxu0 0.0
        %964 = vmatprep.subr.mxu0 0.0
        %965 = vmatpush2.msra.mxu0 0.0
        %966 = vmatprep.subr.mxu0 0.0
        %967 = vmatpush2.msra.mxu0 0.0
        %968 = vmatprep.subr.mxu0 0.0
        %969 = vmatpush2.msra.mxu0 0.0
        %970 = vmatprep.subr.mxu0 0.0
        %971 = vmatpush2.msra.mxu0 0.0
        %972 = vmatprep.subr.mxu0 0.0
        %973 = vmatpush2.msra.mxu0 0.0
        %974 = vmatprep.subr.mxu0 0.0
        %975 = vmatpush2.msra.mxu0 0.0
        %976 = vmatprep.subr.mxu0 0.0
        %977 = vmatpush2.msra.mxu0 0.0
        %978 = vmatprep.subr.mxu0 0.0
        %979 = vmatpush2.msra.mxu0 0.0
        %980 = vmatprep.subr.mxu0 0.0
        %981 = vmatpush2.msra.mxu0 0.0
        %982 = vmatprep.mubr.f32.mxu0 0.0
        %983 = vmatmul.mubr.f32.gmra.mxu0 %v916
        %v984 = vpop.f32.mrf.mxu0
        %v985 = vadd.f32 0.0, %v984
        %v986 = vpop.f32.mrf.mxu0
        %987 = vdwg.mxu0
        %988 = vst.msk [vmem:[%s317] sm:$0xff] %vm342, %v766
        %989 = vst.msk [vmem:[%s317 + $0x8] sm:$0xff] %vm342, %v839
        %990 = vst.msk [vmem:[%s317 + $0x10] sm:$0xff] %vm342, %v912
        %991 = vst.msk [vmem:[%s317 + $0x18] sm:$0xff] %vm342, %v985
        %992 = vst.msk [vmem:[%s324] sm:$0xff] %vm647, %v688
        %993 = vst.msk [vmem:[%s324 + $0x8] sm:$0xff] %vm647, %v689
        %994 = vst.msk [vmem:[%s324 + $0x10] sm:$0xff] %vm647, %v690
        %995 = vst.msk [vmem:[%s324 + $0x18] sm:$0xff] %vm647, %v691
        %s996 = sand.u32 %s132, 1
        %s997 = scalar_lea.sflag [#allocation6], %s996
        %s998 = sand.u32 %s132, 1
        %s999 = smul.addr %s998, 32
        %s1000 = scalar_lea.vmem [#allocation10], %s999
        %s1001 = sand.u32 %s160, 1
        %s1002 = scalar_lea.sflag [#allocation12], %s1001
        %s1003 = sand.u32 %s160, 1
        %s1004 = smul.addr %s1003, 32
        %s1005 = scalar_lea.vmem [#allocation11], %s1004
        // Predicated region
        $region45: #{tpu_custom_call.1} parent=31 // pred_check
          %p1006 = pneg %p142
        $region46: #{tpu_custom_call.1} parent=31 // pred_check_branch
          %1008 = sbr.rel (%p1006) target = $region48
        $region47: #{tpu_custom_call.1} parent=31 // pred_region
          %s1009 = smul.u32 4, %s34
          %s1011 = ssub.s32 512, 512
          %1012 = vsyncadd %s997, %s1011
          %s1013 = sadd.s32 %s35, %s1009
          %s1014 = smul.addr %s1013, 128
          %s1015 = scalar_lea.hbm %s4, %s1014
          %s1016 = sshll.u32 %s1000, 4
          %s1017 = int_to_ptr.vmem [resolvable:$true] %s1016
          %1022 = dma.vmem_to_hbm [thread:$0]  %s1017, 512, %s1015, %s997, 128, 128, 8
        $region48: #{tpu_custom_call.1} parent=31 // pred_fallthru
          _
        // Predicated region
        $region49: #{tpu_custom_call.1} parent=31 // pred_check
          %p1023 = pneg %p170
        $region50: #{tpu_custom_call.1} parent=31 // pred_check_branch
          %1025 = sbr.rel (%p1023) target = $region52
        $region51: #{tpu_custom_call.1} parent=31 // pred_region
          %s1026 = smul.u32 4, %s34
          %s1028 = ssub.s32 512, 512
          %1029 = vsyncadd %s1002, %s1028
          %s1030 = sadd.s32 %s35, %s1026
          %s1031 = smul.addr %s1030, 128
          %s1032 = scalar_lea.hbm %s5, %s1031
          %s1033 = sshll.u32 %s1005, 4
          %s1034 = int_to_ptr.vmem [resolvable:$true] %s1033
          %1039 = dma.vmem_to_hbm [thread:$0]  %s1034, 512, %s1032, %s1002, 128, 128, 8
        $region52: #{tpu_custom_call.1} parent=31 // pred_fallthru
          _
      $region32: #{tpu_custom_call.1} parent=5 // pred_fallthru
        _
      %p1040 = scmp.le.s32.totalorder 2, %s25
      // Predicated region
      $region53: #{tpu_custom_call.1} parent=5 // pred_check
        %p1041 = pneg %p1040
      $region54: #{tpu_custom_call.1} parent=5 // pred_check_branch
        %1043 = sbr.rel (%p1041) target = $region56
      $region55: #{tpu_custom_call.1} parent=5 // pred_region
        %s1044 = ssub.s32 %s25, 2
        // Predicated region
        $region57: #{tpu_custom_call.1} parent=55 // pred_check
          %p1045 = pneg %p148
        $region58: #{tpu_custom_call.1} parent=55 // pred_check_branch
          %1047 = sbr.rel (%p1045) target = $region60
        $region59: #{tpu_custom_call.1} parent=55 // pred_region
          %s1048 = sand.u32 %s133, 1
          %s1049 = scalar_lea.sflag [#allocation6], %s1048
          %s1050 = sand.u32 %s133, 1
          %s1051 = smul.addr %s1050, 32
          %s1052 = scalar_lea.vmem [#allocation10], %s1051
          %1053 = dma.done %s1049, 512
        $region60: #{tpu_custom_call.1} parent=55 // pred_fallthru
          _
        // Predicated region
        $region61: #{tpu_custom_call.1} parent=55 // pred_check
          %p1054 = pneg %p176
        $region62: #{tpu_custom_call.1} parent=55 // pred_check_branch
          %1056 = sbr.rel (%p1054) target = $region64
        $region63: #{tpu_custom_call.1} parent=55 // pred_region
          %s1057 = sand.u32 %s161, 1
          %s1058 = scalar_lea.sflag [#allocation12], %s1057
          %s1059 = sand.u32 %s161, 1
          %s1060 = smul.addr %s1059, 32
          %s1061 = scalar_lea.vmem [#allocation11], %s1060
          %1062 = dma.done %s1058, 512
        $region64: #{tpu_custom_call.1} parent=55 // pred_fallthru
          _
      $region56: #{tpu_custom_call.1} parent=5 // pred_fallthru
        _
    $region6: #{tpu_custom_call.1} parent=1 // loop_footer
      %s29 = sadd.s32 1, %s25
    $region7: #{tpu_custom_call.1} parent=1 // loop_footer_branch
      %24 = sbr.rel target = $region3
    $region8: #{tpu_custom_call.1} parent=1 // loop_exit
      _
    %1063 = vsyncpa [#allocation5], 1
    %s1064 = scalar_lea.sflag [#allocation5], 1
    %1065 = vsyncpa %s1064, 1
    %1066 = vsyncpa [#allocation8], 1
    %s1067 = scalar_lea.sflag [#allocation8], 1
    %1068 = vsyncpa %s1067, 1
    %1069 = vsyncpa [#allocation6], 1
    %s1070 = scalar_lea.sflag [#allocation6], 1
    %1071 = vsyncpa %s1070, 1
    %1072 = vsyncpa [#allocation12], 1
    %s1073 = scalar_lea.sflag [#allocation12], 1
    %1074 = vsyncpa %s1073, 1

</llo_original>
